<compile_context>
chip_gen: v7x
topology: tpu7x:2x2x1
jax: 0.10.0
libtpu: 0.0.40
codegen_flags: <defaults>
</compile_context>

<pallas_src>
import jax
import jax.numpy as jnp
import numpy as np
from jax.experimental import pallas as pl
from jax.experimental.pallas import tpu as pltpu

BN_EPS = 1e-5


def _round_up(x, m):
    return ((x + m - 1) // m) * m


def _pick_tile(n_pad, cap):
    """Largest multiple of 128 that divides n_pad and is <= cap."""
    best = 128
    for cand in range(128, min(cap, n_pad) + 1, 128):
        if n_pad % cand == 0:
            best = cand
    return best


def _device_kind():
    try:
        return jax.devices()[0].device_kind.lower()
    except Exception:
        return ""


# --------------------------------------------------------------------------
# Kernel 1: fused y = x @ W + b   (W holds [Wq | Wk | Wv])
# --------------------------------------------------------------------------
def _linear_kernel(x_ref, w_ref, b_ref, o_ref):
    o_ref[...] = (jnp.dot(x_ref[...], w_ref[...],
                          preferred_element_type=jnp.float32)
                  + b_ref[...]).astype(o_ref.dtype)


def pallas_linear(x, w_t, b, tile_n):
    N, cin = x.shape
    cout = w_t.shape[1]
    return pl.pallas_call(
        _linear_kernel,
        out_shape=jax.ShapeDtypeStruct((N, cout), jnp.float32),
        grid_spec=pltpu.PrefetchScalarGridSpec(
            num_scalar_prefetch=0,
            grid=(N // tile_n,),
            in_specs=[
                pl.BlockSpec((tile_n, cin), lambda i: (i, 0)),
                pl.BlockSpec((cin, cout), lambda i: (0, 0)),
                pl.BlockSpec((1, cout), lambda i: (0, 0)),
            ],
            out_specs=pl.BlockSpec((tile_n, cout), lambda i: (i, 0)),
        ),
        compiler_params=pltpu.CompilerParams(dimension_semantics=("parallel",)),
    )(x, w_t, b.reshape(1, cout))


# --------------------------------------------------------------------------
# Kernel 2: masked pairwise squared distances via the norm identity (MXU)
#           d[i,j] = |pi|^2 + |pj|^2 - 2 pi.pj  ;  cross-segment -> +inf
# --------------------------------------------------------------------------
def _pdist_kernel(pa_ref, pbt_ref, bia_ref, bib_ref, o_ref):
    pa = pa_ref[...]                                    # (TM, 3)
    pbt = pbt_ref[...]                                  # (3, TK)
    na = jnp.sum(pa * pa, axis=1, keepdims=True)        # (TM, 1)
    nb = jnp.sum(pbt * pbt, axis=0, keepdims=True)      # (1, TK)
    d = na + nb - 2.0 * jnp.dot(pa, pbt, preferred_element_type=jnp.float32)
    same = bia_ref[...] == bib_ref[...]                 # (TM, TK)
    o_ref[...] = jnp.where(same, d, jnp.inf)


def pallas_pairwise_sqdist(p, batch_id, tile_m, tile_k):
    N = p.shape[0]
    p_t = p.T                                           # (3, N): tiny transpose
    bid_r = batch_id.reshape(N, 1)
    bid_c = batch_id.reshape(1, N)
    return pl.pallas_call(
        _pdist_kernel,
        out_shape=jax.ShapeDtypeStruct((N, N), jnp.float32),
        grid_spec=pltpu.PrefetchScalarGridSpec(
            num_scalar_prefetch=0,
            grid=(N // tile_m, N // tile_k),
            in_specs=[
                pl.BlockSpec((tile_m, 3), lambda i, j: (i, 0)),
                pl.BlockSpec((3, tile_k), lambda i, j: (0, j)),
                pl.BlockSpec((tile_m, 1), lambda i, j: (i, 0)),
                pl.BlockSpec((1, tile_k), lambda i, j: (0, j)),
            ],
            out_specs=pl.BlockSpec((tile_m, tile_k), lambda i, j: (i, j)),
        ),
        compiler_params=pltpu.CompilerParams(
            dimension_semantics=("parallel", "parallel")),
    )(p, p_t, bid_r, bid_c)


# --------------------------------------------------------------------------
# Kernel 3: fused point-transformer attention body
#   inputs: qry = [p | x_q] per point, grp = [p | x_k | x_v] per neighbor
#   (the last linear_w weights arrive pre-tiled to C columns, so the
#    share_planes replication is free.)
# --------------------------------------------------------------------------
def _pt_attn_kernel(qry_ref, grp_ref,
                    wp1_ref, bp1_ref, wp2_ref, bp2_ref,
                    sw1_ref, tw1_ref, ww1_ref, bw1_ref,
                    ww2_ref, bw2_ref, o_ref):
    TN, NS, _ = grp_ref.shape
    mid = qry_ref.shape[-1] - 3
    C = o_ref.shape[-1]

    qry = qry_ref[...]                                   # (TN, 3+mid)
    grp = grp_ref[...]                                   # (TN, NS, 3+mid+C)

    p_r = grp[:, :, 0:3] - qry[:, None, 0:3]             # (TN, NS, 3)
    xk_g = grp[:, :, 3:3 + mid]                          # (TN, NS, mid)
    xv_g = grp[:, :, 3 + mid:3 + mid + C]                # (TN, NS, C)
    x_q = qry[:, 3:3 + mid]                              # (TN, mid)

    # ---- linear_p stage 1: Linear(3,3)[BN folded] -> ReLU (VPU FMAs; the MXU
    # at K=N=3 would idle, and the VALU cost here is tiny) ----
    w1 = wp1_ref[...]                                    # (3, 3)
    h = (p_r[:, :, 0:1] * w1[0:1, :] + p_r[:, :, 1:2] * w1[1:2, :]
         + p_r[:, :, 2:3] * w1[2:3, :] + bp1_ref[...])
    h = jnp.maximum(h, 0.0)                              # (TN, NS, 3)

    # ---- linear_p stage 2: Linear(3, C) on the otherwise-idle MXU ----
    p_emb = (jnp.dot(h.reshape(TN * NS, 3), wp2_ref[...],
                     preferred_element_type=jnp.float32)
             + bp2_ref[...])                             # (TN*NS, C)
    p_emb3 = p_emb.reshape(TN, NS, C)

    # ---- w = x_k - x_q + p_r  (out_planes == mid_planes: .view().sum(2) is identity)
    w3 = xk_g - x_q[:, None, :] + p_emb3                 # (TN, NS, mid)
    w = w3.reshape(TN * NS, mid)

    # ---- linear_w: BN (pre-scaled) -> ReLU -> Linear[+BN folded] -> ReLU
    #      -> Linear (weights pre-tiled to C columns on the host) ----
    w = jnp.maximum(w * sw1_ref[...] + tw1_ref[...], 0.0)
    w = jnp.dot(w, ww1_ref[...], preferred_element_type=jnp.float32) + bw1_ref[...]
    w = jnp.maximum(w, 0.0)
    w = jnp.dot(w, ww2_ref[...], preferred_element_type=jnp.float32) + bw2_ref[...]
    w3 = w.reshape(TN, NS, C)

    # ---- softmax over the neighbor axis (PyTorch dim=1); divide -> EUP recip ----
    wmax = jnp.max(w3, axis=1, keepdims=True)
    we = jnp.exp(w3 - wmax)
    wsm = we * pl.reciprocal(jnp.sum(we, axis=1, keepdims=True), approx=True)

    # ---- weighted aggregation (share_planes grouping already folded into ww2) ----
    v3 = xv_g + p_emb3
    o_ref[...] = jnp.sum(v3 * wsm, axis=1).astype(o_ref.dtype)


# --------------------------------------------------------------------------
# Wrapper: full PointTransformerLayer forward
# --------------------------------------------------------------------------
def point_transformer_layer(p, x, o, params, *, share_planes, nsample,
                            attn_tile_cap=256):
    N = x.shape[0]
    mid = params["wq"].shape[1]
    C = params["wv"].shape[1]
    csh = C // share_planes

    kind = _device_kind()
    is_v5e = ("v5 lite" in kind) or ("v5e" in kind) or ("v5lite" in kind)

    # Attention row tile: 256, capped to 128 on v5e (1 vst slot, 16 MiB default
    # scoped VMEM).  Pad N so no remainder rows are dropped.
    cap = min(attn_tile_cap, 128 if is_v5e else 256)
    T = min(cap, _round_up(N, 128))
    N_pad = _round_up(N, T)
    if N_pad // T == 1 and T > 128:
        T //= 2                      # make the row grid >= 2 so both v7x cores work
    # Decoupled, larger tiles for the HBM-bound linear / pdist kernels.
    T_lin = _pick_tile(N_pad, 1024)
    T_pd = _pick_tile(N_pad, 512)    # 512 is ~85% of HBM roofline; safe on all gens

    pad = N_pad - N
    p_pad = jnp.pad(p, ((0, pad), (0, 0)))
    x_pad = jnp.pad(x, ((0, pad), (0, 0)))

    # ---- fused q/k/v projection (single MXU pass, x read once) ----
    w_qkv = jnp.concatenate([params["wq"], params["wk"], params["wv"]], axis=1)
    b_qkv = jnp.concatenate([params["bq"], params["bk"], params["bv"]])
    qkv = pallas_linear(x_pad, w_qkv, b_qkv, T_lin)      # (N_pad, 2*mid + C)

    # ---- kNN query: masked distances in Pallas, top-k + gather in XLA ----
    # TODO(synk): streaming top-k inside the pdist kernel + in-kernel gather via
    # scalar-prefetched idx would remove the N^2 and grp HBM round trips.
    batch_id = jnp.sum(jnp.arange(N_pad)[:, None] >= o[None, :],
                       axis=1).astype(jnp.int32)         # pad rows get their own id
    sqdist = pallas_pairwise_sqdist(p_pad, batch_id, T_pd, T_pd)
    _, idx = jax.lax.top_k(-sqdist, nsample)             # (N_pad, nsample), self first

    # Single packed gather: [p | x_k | x_v] per neighbor (queryandgroup, use_xyz=True).
    src = jnp.concatenate([p_pad, qkv[:, mid:]], axis=1)          # (N_pad, 3+mid+C)
    grp = jnp.take(src, idx, axis=0)                              # (N_pad, ns, 3+mid+C)
    qry = jnp.concatenate([p_pad, qkv[:, :mid]], axis=1)          # (N_pad, 3+mid)

    # ---- fold eval-mode BatchNorm affines into the adjacent Linears; tile the
    #      final linear_w weight/bias to C columns (share_planes folding) ----
    inv = 1.0 / float(np.sqrt(1.0 + BN_EPS))
    sp = params["gp"] * inv
    wp1f = params["wp1"] * sp[None, :]
    bp1f = (params["bp1"] * sp + params["betap"]).reshape(1, 3)
    sw2 = params["gw2"] * inv
    ww1f = params["ww1"] * sw2[None, :]
    bw1f = (params["bw1"] * sw2 + params["betaw2"]).reshape(1, csh)
    sw1 = (params["gw1"] * inv).reshape(1, mid)
    tw1 = params["betaw1"].reshape(1, mid)
    ww2_exp = jnp.tile(params["ww2"], (1, share_planes))          # (csh, C)
    bw2_exp = jnp.tile(params["bw2"], share_planes).reshape(1, C)

    def _full(shape):
        nd = len(shape)
        return pl.BlockSpec(shape, lambda i, _nd=nd: (0,) * _nd)

    cfeat = 3 + mid + C
    cq = 3 + mid
    out = pl.pallas_call(
        _pt_attn_kernel,
        out_shape=jax.ShapeDtypeStruct((N_pad, C), jnp.float32),
        grid_spec=pltpu.PrefetchScalarGridSpec(
            num_scalar_prefetch=0,
            grid=(N_pad // T,),
            in_specs=[
                pl.BlockSpec((T, cq), lambda i: (i, 0)),                 # [p | x_q]
                pl.BlockSpec((T, nsample, cfeat), lambda i: (i, 0, 0)),  # packed nbrs
                _full((3, 3)), _full((1, 3)),
                _full((3, C)), _full((1, C)),
                _full((1, mid)), _full((1, mid)),
                _full((mid, csh)), _full((1, csh)),
                _full((csh, C)), _full((1, C)),
            ],
            out_specs=pl.BlockSpec((T, C), lambda i: (i, 0)),
        ),
        compiler_params=pltpu.CompilerParams(
            dimension_semantics=("parallel",),
            vmem_limit_bytes=48 * 1024 * 1024),
    )(qry, grp,
      wp1f, bp1f, params["wp2"], params["bp2"].reshape(1, C),
      sw1, tw1, ww1f, bw1f,
      ww2_exp, bw2_exp)
    return out[:N]


# --------------------------------------------------------------------------
# Deterministic parameter init (shapes from the PyTorch __init__)
# --------------------------------------------------------------------------
def init_params(key, in_planes, out_planes, share_planes):
    mid = out_planes
    csh = out_planes // share_planes
    ks = jax.random.split(key, 10)

    def lin(k, fan_in, fan_out):
        kw, kb = jax.random.split(k)
        bound = 1.0 / np.sqrt(fan_in)
        w = jax.random.uniform(kw, (fan_in, fan_out), jnp.float32, -bound, bound)
        b = jax.random.uniform(kb, (fan_out,), jnp.float32, -bound, bound)
        return w, b

    def bn(k, c):
        kg, kb = jax.random.split(k)
        g = 1.0 + 0.1 * jax.random.normal(kg, (c,), jnp.float32)
        be = 0.1 * jax.random.normal(kb, (c,), jnp.float32)
        return g, be

    prm = {}
    prm["wq"], prm["bq"] = lin(ks[0], in_planes, mid)
    prm["wk"], prm["bk"] = lin(ks[1], in_planes, mid)
    prm["wv"], prm["bv"] = lin(ks[2], in_planes, out_planes)
    prm["wp1"], prm["bp1"] = lin(ks[3], 3, 3)
    prm["gp"], prm["betap"] = bn(ks[4], 3)
    prm["wp2"], prm["bp2"] = lin(ks[5], 3, out_planes)
    prm["gw1"], prm["betaw1"] = bn(ks[6], mid)
    prm["ww1"], prm["bw1"] = lin(ks[7], mid, csh)
    prm["gw2"], prm["betaw2"] = bn(ks[8], csh)
    prm["ww2"], prm["bw2"] = lin(ks[9], csh, csh)
    return prm


# --------------------------------------------------------------------------
# Plain-JAX reference (same math, no Pallas, no folding)
# --------------------------------------------------------------------------
def reference_forward(p, x, o, params, share_planes, nsample):
    N = x.shape[0]
    C = params["wv"].shape[1]
    csh = C // share_planes
    inv = 1.0 / float(np.sqrt(1.0 + BN_EPS))

    x_q = x @ params["wq"] + params["bq"]
    x_k = x @ params["wk"] + params["bk"]
    x_v = x @ params["wv"] + params["bv"]

    diff = p[:, None, :] - p[None, :, :]
    sqdist = jnp.sum(diff * diff, axis=-1)
    batch_id = jnp.sum(jnp.arange(N)[:, None] >= o[None, :], axis=1)
    same = batch_id[:, None] == batch_id[None, :]
    sqdist = jnp.where(same, sqdist, jnp.inf)
    _, idx = jax.lax.top_k(-sqdist, nsample)

    p_r = p[idx] - p[:, None, :]
    xk_g = x_k[idx]
    xv_g = x_v[idx]

    h = p_r @ params["wp1"] + params["bp1"]
    h = h * (params["gp"] * inv) + params["betap"]
    h = jnp.maximum(h, 0.0)
    p_emb = h @ params["wp2"] + params["bp2"]

    w = xk_g - x_q[:, None, :] + p_emb
    w = w * (params["gw1"] * inv) + params["betaw1"]
    w = jnp.maximum(w, 0.0)
    w = w @ params["ww1"] + params["bw1"]
    w = w * (params["gw2"] * inv) + params["betaw2"]
    w = jnp.maximum(w, 0.0)
    w = w @ params["ww2"] + params["bw2"]
    w = jax.nn.softmax(w, axis=1)

    v = (xv_g + p_emb).reshape(N, nsample, share_planes, csh)
    return jnp.sum(v * w[:, :, None, :], axis=1).reshape(N, C)


if __name__ == "__main__":
    key = jax.random.PRNGKey(0)
    N, in_planes, out_planes = 64, 32, 32
    share_planes, nsample = 8, 16

    kp, kx, kparam = jax.random.split(key, 3)
    p = jax.random.uniform(kp, (N, 3), jnp.float32)
    x = jax.random.normal(kx, (N, in_planes), jnp.float32)
    o = jnp.array([32, 64], dtype=jnp.int32)     # pointops-style batch offsets (2 segments)
    params = init_params(kparam, in_planes, out_planes, share_planes)

    out = point_transformer_layer(p, x, o, params,
                                  share_planes=share_planes,
                                  nsample=nsample)
    out = jax.block_until_ready(out)
    assert out.shape == (N, out_planes)

    ref = reference_forward(p, x, o, params, share_planes, nsample)
    np.testing.assert_allclose(np.asarray(out), np.asarray(ref), rtol=2e-2, atol=2e-2)
    print("KERNEL_OK")
</pallas_src>

<mosaic_0001>
module attributes {stable_mosaic.version = 11 : i64} {
  func.func @_linear_kernel(%arg0: i32, %arg1: memref<128x32xf32, #tpu.memory_space<vmem>>, %arg2: memref<32x96xf32, #tpu.memory_space<vmem>>, %arg3: memref<1x96xf32, #tpu.memory_space<vmem>>, %arg4: memref<128x96xf32, #tpu.memory_space<vmem>>) attributes {dimension_semantics = [#tpu.dimension_semantics<parallel>], iteration_bounds = array<i64: 1>, scalar_prefetch = 0 : i64, scratch_operands = 0 : i64, tpu.core_type = #tpu.core_type<tc>, window_params = [{transform_indices = @transform_0, window_bounds = array<i64: 128, 32>}, {pipeline_mode = #tpu.pipeline_mode<synchronous>, transform_indices = @transform_1, window_bounds = array<i64: 32, 96>}, {pipeline_mode = #tpu.pipeline_mode<synchronous>, transform_indices = @transform_2, window_bounds = array<i64: 1, 96>}, {transform_indices = @transform_3, window_bounds = array<i64: 128, 96>}]} {
    %c0 = arith.constant 0 : index
    %c0_0 = arith.constant 0 : index
    %0 = vector.load %arg1[%c0, %c0_0] : memref<128x32xf32, #tpu.memory_space<vmem>>, vector<128x32xf32>
    %c0_1 = arith.constant 0 : index
    %c0_2 = arith.constant 0 : index
    %1 = vector.load %arg2[%c0_1, %c0_2] : memref<32x96xf32, #tpu.memory_space<vmem>>, vector<32x96xf32>
    %cst = arith.constant dense<0.000000e+00> : vector<128x96xf32>
    %2 = tpu.matmul %0, %1, %cst {dimension_numbers = #tpu.dot_dimension_numbers<[1], [0], [0], [1], [0, 0, 1, 1], [], []>} : vector<128x32xf32>, vector<32x96xf32>, vector<128x96xf32> -> vector<128x96xf32>
    %c0_3 = arith.constant 0 : index
    %c0_4 = arith.constant 0 : index
    %3 = vector.load %arg3[%c0_3, %c0_4] : memref<1x96xf32, #tpu.memory_space<vmem>>, vector<1x96xf32>
    %4 = vector.broadcast %3 : vector<1x96xf32> to vector<128x96xf32>
    %5 = arith.addf %2, %4 : vector<128x96xf32>
    %c0_5 = arith.constant 0 : index
    %c0_6 = arith.constant 0 : index
    %6 = vector.load %arg4[%c0_5, %c0_6] : memref<128x96xf32, #tpu.memory_space<vmem>>, vector<128x96xf32>
    tpu.vector_store %arg4[%c0_5, %c0_6], %5 {strides = array<i32>} : memref<128x96xf32, #tpu.memory_space<vmem>>, vector<128x96xf32>,
    return
  }
  func.func @transform_0(%arg0: i32) -> (i32, i32) {
    %c0_i32 = arith.constant 0 : i32
    %c0_i32_0 = arith.constant 0 : i32
    return %arg0, %c0_i32 : i32, i32
  }
  func.func @transform_1(%arg0: i32) -> (i32, i32) {
    %c0_i32 = arith.constant 0 : i32
    %c0_i32_0 = arith.constant 0 : i32
    %c0_i32_1 = arith.constant 0 : i32
    return %c0_i32, %c0_i32_0 : i32, i32
  }
  func.func @transform_2(%arg0: i32) -> (i32, i32) {
    %c0_i32 = arith.constant 0 : i32
    %c0_i32_0 = arith.constant 0 : i32
    %c0_i32_1 = arith.constant 0 : i32
    return %c0_i32, %c0_i32_0 : i32, i32
  }
  func.func @transform_3(%arg0: i32) -> (i32, i32) {
    %c0_i32 = arith.constant 0 : i32
    %c0_i32_0 = arith.constant 0 : i32
    return %arg0, %c0_i32 : i32, i32
  }
}

</mosaic_0001>

<llo_original>
// kernel: tpu_custom_call.1
$region0: #{tpu_custom_call.1}
  #allocation0 [shape = 'u32[]', space=smem, size = 0x4, offset = 0x4, fixed_abs, tag = 'smem constant byte address 0x4 - core index']
  #allocation1 [shape = 'u32[144,128]{1,0:T(1,128)}', space=vmem, size = 0x12000, scoped, tag = 'internal scratch']
  %s0 = inlined_call_operand.vmem [shape: f32[128,32], index: 0, kind: input, shape index: {}]
  %s1 = inlined_call_operand.vmem [shape: f32[32,96], index: 1, kind: input, shape index: {}]
  %s2 = inlined_call_operand.vmem [shape: f32[1,96], index: 2, kind: input, shape index: {}]
  %s3 = inlined_call_operand.vmem [shape: f32[128,96], index: 3, kind: output, shape index: {}]
  %s4 = sld [smem:[#allocation0]]
  $region22: #{tpu_custom_call.1} parent=0
    _
  %s6 = ssub.s32 1, %s4
  %s7 = scalar_select 0, %s6, %s4
  // Predicated region
  $region2: #{tpu_custom_call.1} parent=0 // pred_check
    _
  $region3: #{tpu_custom_call.1} parent=0 // pred_check_branch
    %9 = sbr.rel (0) target = $region5
  $region4: #{tpu_custom_call.1} parent=0 // pred_region
    _
  $region5: #{tpu_custom_call.1} parent=0 // pred_fallthru
    _
  // Predicated region
  $region6: #{tpu_custom_call.1} parent=0 // pred_check
    _
  $region7: #{tpu_custom_call.1} parent=0 // pred_check_branch
    %11 = sbr.rel (0) target = $region9
  $region8: #{tpu_custom_call.1} parent=0 // pred_region
    _
  $region9: #{tpu_custom_call.1} parent=0 // pred_fallthru
    _
  // Predicated region
  $region10: #{tpu_custom_call.1} parent=0 // pred_check
    _
  $region11: #{tpu_custom_call.1} parent=0 // pred_check_branch
    %13 = sbr.rel (0) target = $region13
  $region12: #{tpu_custom_call.1} parent=0 // pred_region
    _
  $region13: #{tpu_custom_call.1} parent=0 // pred_fallthru
    _
  %v14 = vld [vmem:[%s0] sm:$0xff]
  %v15 = vld [vmem:[%s0 + $0x8] sm:$0xff]
  %v16 = vld [vmem:[%s0 + $0x10] sm:$0xff]
  %v17 = vld [vmem:[%s0 + $0x18] sm:$0xff]
  %v18 = vld [vmem:[%s0 + $0x20] sm:$0xff]
  %v19 = vld [vmem:[%s0 + $0x28] sm:$0xff]
  %v20 = vld [vmem:[%s0 + $0x30] sm:$0xff]
  %v21 = vld [vmem:[%s0 + $0x38] sm:$0xff]
  %v22 = vld [vmem:[%s0 + $0x40] sm:$0xff]
  %v23 = vld [vmem:[%s0 + $0x48] sm:$0xff]
  %v24 = vld [vmem:[%s0 + $0x50] sm:$0xff]
  %v25 = vld [vmem:[%s0 + $0x58] sm:$0xff]
  %v26 = vld [vmem:[%s0 + $0x60] sm:$0xff]
  %v27 = vld [vmem:[%s0 + $0x68] sm:$0xff]
  %v28 = vld [vmem:[%s0 + $0x70] sm:$0xff]
  %v29 = vld [vmem:[%s0 + $0x78] sm:$0xff]
  %v30 = vld [vmem:[%s1] sm:$0xff]
  %v31 = vld [vmem:[%s1 + $0x8] sm:$0xff]
  %v32 = vld [vmem:[%s1 + $0x10] sm:$0xff]
  %v33 = vld [vmem:[%s1 + $0x18] sm:$0xff]
  %v34 = vld [vmem:[%s2] sm:$0x1]
  %v36 = vlaneseq
  %v37 = vshrl.u32 %v36, 7
  %v38 = vsub.s32 0, %v37
  %v39 = vrot.slane %v34, %v38
  %vm41 = vcmask 261120
  %v43 = vsel %vm41, %v14, 0
  %v46 = vsel %vm41, %v15, 0
  %v49 = vsel %vm41, %v16, 0
  %v52 = vsel %vm41, %v17, 0
  %v55 = vsel %vm41, %v18, 0
  %v58 = vsel %vm41, %v19, 0
  %v61 = vsel %vm41, %v20, 0
  %v64 = vsel %vm41, %v21, 0
  %v67 = vsel %vm41, %v22, 0
  %v70 = vsel %vm41, %v23, 0
  %v73 = vsel %vm41, %v24, 0
  %v76 = vsel %vm41, %v25, 0
  %v79 = vsel %vm41, %v26, 0
  %v82 = vsel %vm41, %v27, 0
  %v85 = vsel %vm41, %v28, 0
  %v88 = vsel %vm41, %v29, 0
  %90 = vmatprep.subr.mxu0 0.0
  %91 = vmatpush1.msra.mxu0 %v30
  %92 = vmatprep.subr.mxu0 0.0
  %93 = vmatpush1.msra.mxu0 %v31
  %94 = vmatprep.subr.mxu0 0.0
  %95 = vmatpush1.msra.mxu0 %v32
  %96 = vmatprep.subr.mxu0 0.0
  %97 = vmatpush1.msra.mxu0 %v33
  %98 = vmatprep.subr.mxu0 0.0
  %99 = vmatpush1.msra.mxu0 0.0
  %100 = vmatprep.subr.mxu0 0.0
  %101 = vmatpush1.msra.mxu0 0.0
  %102 = vmatprep.subr.mxu0 0.0
  %103 = vmatpush1.msra.mxu0 0.0
  %104 = vmatprep.subr.mxu0 0.0
  %105 = vmatpush1.msra.mxu0 0.0
  %106 = vmatprep.subr.mxu0 0.0
  %107 = vmatpush1.msra.mxu0 0.0
  %108 = vmatprep.subr.mxu0 0.0
  %109 = vmatpush1.msra.mxu0 0.0
  %110 = vmatprep.subr.mxu0 0.0
  %111 = vmatpush1.msra.mxu0 0.0
  %112 = vmatprep.subr.mxu0 0.0
  %113 = vmatpush1.msra.mxu0 0.0
  %114 = vmatprep.subr.mxu0 0.0
  %115 = vmatpush1.msra.mxu0 0.0
  %116 = vmatprep.subr.mxu0 0.0
  %117 = vmatpush1.msra.mxu0 0.0
  %118 = vmatprep.subr.mxu0 0.0
  %119 = vmatpush1.msra.mxu0 0.0
  %120 = vmatprep.subr.mxu0 0.0
  %121 = vmatpush1.msra.mxu0 0.0
  %122 = vmatprep.subr.mxu0 0.0
  %123 = vmatpush1.msra.mxu0 0.0
  %124 = vmatprep.subr.mxu0 0.0
  %125 = vmatpush1.msra.mxu0 0.0
  %126 = vmatprep.subr.mxu0 0.0
  %127 = vmatpush1.msra.mxu0 0.0
  %128 = vmatprep.subr.mxu0 0.0
  %129 = vmatpush1.msra.mxu0 0.0
  %130 = vmatprep.subr.mxu0 0.0
  %131 = vmatpush1.msra.mxu0 0.0
  %132 = vmatprep.subr.mxu0 0.0
  %133 = vmatpush1.msra.mxu0 0.0
  %134 = vmatprep.subr.mxu0 0.0
  %135 = vmatpush1.msra.mxu0 0.0
  %136 = vmatprep.subr.mxu0 0.0
  %137 = vmatpush1.msra.mxu0 0.0
  %138 = vmatprep.subr.mxu0 0.0
  %139 = vmatpush1.msra.mxu0 0.0
  %140 = vmatprep.subr.mxu0 0.0
  %141 = vmatpush1.msra.mxu0 0.0
  %142 = vmatprep.subr.mxu0 0.0
  %143 = vmatpush1.msra.mxu0 0.0
  %144 = vmatprep.subr.mxu0 0.0
  %145 = vmatpush1.msra.mxu0 0.0
  %146 = vmatprep.subr.mxu0 0.0
  %147 = vmatpush1.msra.mxu0 0.0
  %148 = vmatprep.subr.mxu0 0.0
  %149 = vmatpush1.msra.mxu0 0.0
  %150 = vmatprep.subr.mxu0 0.0
  %151 = vmatpush1.msra.mxu0 0.0
  %152 = vmatprep.subr.mxu0 0.0
  %153 = vmatpush1.msra.mxu0 0.0
  %154 = vmatprep.mubr.f32.mxu0 0.0
  %155 = vmatmul.mubr.f32.gmra.mrb[0].mxu0 %v43
  %v156 = vpop.f32.mrb[0].mxu0
  %v157 = vadd.f32 %v39, %v156
  %v158 = vpop.f32.mrb[0].mxu0
  %159 = vmatprep.mubr.f32.mxu0 0.0
  %160 = vmatmul.mubr.f32.gmra.mrb[0].mxu0 %v46
  %v161 = vpop.f32.mrb[0].mxu0
  %v162 = vadd.f32 %v39, %v161
  %v163 = vpop.f32.mrb[0].mxu0
  %164 = vmatprep.mubr.f32.mxu0 0.0
  %165 = vmatmul.mubr.f32.gmra.mrb[0].mxu0 %v49
  %v166 = vpop.f32.mrb[0].mxu0
  %v167 = vadd.f32 %v39, %v166
  %v168 = vpop.f32.mrb[0].mxu0
  %169 = vmatprep.mubr.f32.mxu0 0.0
  %170 = vmatmul.mubr.f32.gmra.mrb[0].mxu0 %v52
  %v171 = vpop.f32.mrb[0].mxu0
  %v172 = vadd.f32 %v39, %v171
  %v173 = vpop.f32.mrb[0].mxu0
  %174 = vmatprep.mubr.f32.mxu0 0.0
  %175 = vmatmul.mubr.f32.gmra.mrb[0].mxu0 %v55
  %v176 = vpop.f32.mrb[0].mxu0
  %v177 = vadd.f32 %v39, %v176
  %v178 = vpop.f32.mrb[0].mxu0
  %179 = vmatprep.mubr.f32.mxu0 0.0
  %180 = vmatmul.mubr.f32.gmra.mrb[0].mxu0 %v58
  %v181 = vpop.f32.mrb[0].mxu0
  %v182 = vadd.f32 %v39, %v181
  %v183 = vpop.f32.mrb[0].mxu0
  %184 = vmatprep.mubr.f32.mxu0 0.0
  %185 = vmatmul.mubr.f32.gmra.mrb[0].mxu0 %v61
  %v186 = vpop.f32.mrb[0].mxu0
  %v187 = vadd.f32 %v39, %v186
  %v188 = vpop.f32.mrb[0].mxu0
  %189 = vmatprep.mubr.f32.mxu0 0.0
  %190 = vmatmul.mubr.f32.gmra.mrb[0].mxu0 %v64
  %v191 = vpop.f32.mrb[0].mxu0
  %v192 = vadd.f32 %v39, %v191
  %v193 = vpop.f32.mrb[0].mxu0
  %194 = vmatprep.mubr.f32.mxu0 0.0
  %195 = vmatmul.mubr.f32.gmra.mrb[0].mxu0 %v67
  %v196 = vpop.f32.mrb[0].mxu0
  %v197 = vadd.f32 %v39, %v196
  %v198 = vpop.f32.mrb[0].mxu0
  %199 = vmatprep.mubr.f32.mxu0 0.0
  %200 = vmatmul.mubr.f32.gmra.mrb[0].mxu0 %v70
  %v201 = vpop.f32.mrb[0].mxu0
  %v202 = vadd.f32 %v39, %v201
  %v203 = vpop.f32.mrb[0].mxu0
  %204 = vmatprep.mubr.f32.mxu0 0.0
  %205 = vmatmul.mubr.f32.gmra.mrb[0].mxu0 %v73
  %v206 = vpop.f32.mrb[0].mxu0
  %v207 = vadd.f32 %v39, %v206
  %v208 = vpop.f32.mrb[0].mxu0
  %209 = vmatprep.mubr.f32.mxu0 0.0
  %210 = vmatmul.mubr.f32.gmra.mrb[0].mxu0 %v76
  %v211 = vpop.f32.mrb[0].mxu0
  %v212 = vadd.f32 %v39, %v211
  %v213 = vpop.f32.mrb[0].mxu0
  %214 = vmatprep.mubr.f32.mxu0 0.0
  %215 = vmatmul.mubr.f32.gmra.mrb[0].mxu0 %v79
  %v216 = vpop.f32.mrb[0].mxu0
  %v217 = vadd.f32 %v39, %v216
  %v218 = vpop.f32.mrb[0].mxu0
  %219 = vmatprep.mubr.f32.mxu0 0.0
  %220 = vmatmul.mubr.f32.gmra.mrb[0].mxu0 %v82
  %v221 = vpop.f32.mrb[0].mxu0
  %v222 = vadd.f32 %v39, %v221
  %v223 = vpop.f32.mrb[0].mxu0
  %224 = vmatprep.mubr.f32.mxu0 0.0
  %225 = vmatmul.mubr.f32.gmra.mrb[0].mxu0 %v85
  %v226 = vpop.f32.mrb[0].mxu0
  %v227 = vadd.f32 %v39, %v226
  %v228 = vpop.f32.mrb[0].mxu0
  %229 = vmatprep.mubr.f32.mxu0 0.0
  %230 = vmatmul.mubr.f32.gmra.mrb[0].mxu0 %v88
  %v231 = vpop.f32.mrb[0].mxu0
  %v232 = vadd.f32 %v39, %v231
  %v233 = vpop.f32.mrb[0].mxu0
  %234 = vdwg.mxu0
  %vm235 = vcmask 785408
  %236 = vst.msk [vmem:[%s3] sm:$0xff] %vm235, %v157
  %237 = vst.msk [vmem:[%s3 + $0x8] sm:$0xff] %vm235, %v162
  %238 = vst.msk [vmem:[%s3 + $0x10] sm:$0xff] %vm235, %v167
  %239 = vst.msk [vmem:[%s3 + $0x18] sm:$0xff] %vm235, %v172
  %240 = vst.msk [vmem:[%s3 + $0x20] sm:$0xff] %vm235, %v177
  %241 = vst.msk [vmem:[%s3 + $0x28] sm:$0xff] %vm235, %v182
  %242 = vst.msk [vmem:[%s3 + $0x30] sm:$0xff] %vm235, %v187
  %243 = vst.msk [vmem:[%s3 + $0x38] sm:$0xff] %vm235, %v192
  %244 = vst.msk [vmem:[%s3 + $0x40] sm:$0xff] %vm235, %v197
  %245 = vst.msk [vmem:[%s3 + $0x48] sm:$0xff] %vm235, %v202
  %246 = vst.msk [vmem:[%s3 + $0x50] sm:$0xff] %vm235, %v207
  %247 = vst.msk [vmem:[%s3 + $0x58] sm:$0xff] %vm235, %v212
  %248 = vst.msk [vmem:[%s3 + $0x60] sm:$0xff] %vm235, %v217
  %249 = vst.msk [vmem:[%s3 + $0x68] sm:$0xff] %vm235, %v222
  %250 = vst.msk [vmem:[%s3 + $0x70] sm:$0xff] %vm235, %v227
  %251 = vst.msk [vmem:[%s3 + $0x78] sm:$0xff] %vm235, %v232
  // Predicated region
  $region14: #{tpu_custom_call.1} parent=0 // pred_check
    _
  $region15: #{tpu_custom_call.1} parent=0 // pred_check_branch
    %253 = sbr.rel (0) target = $region17
  $region16: #{tpu_custom_call.1} parent=0 // pred_region
    _
  $region17: #{tpu_custom_call.1} parent=0 // pred_fallthru
    _
  // Predicated region
  $region18: #{tpu_custom_call.1} parent=0 // pred_check
    _
  $region19: #{tpu_custom_call.1} parent=0 // pred_check_branch
    %255 = sbr.rel (0) target = $region21
  $region20: #{tpu_custom_call.1} parent=0 // pred_region
    _
  $region21: #{tpu_custom_call.1} parent=0 // pred_fallthru
    _

</llo_original>
